<compile_context>
chip_gen: v7x
topology: tpu7x:2x2x1
jax: 0.10.0
libtpu: 0.0.40
codegen_flags: <defaults>
</compile_context>

<pallas_src>
import functools

import jax
import jax.numpy as jnp
from jax.experimental import pallas as pl
from jax.experimental.pallas import tpu as pltpu

IN_FEATURES = 28 * 28   # 784
SIZE_HIDDEN = 100
SIZE_OUT = 10

H_PAD = 128             # hidden width padded to lane width
O_PAD = 128             # output width padded to lane width


def _round_up(n, m):
    return ((n + m - 1) // m) * m


def _mlp_kernel(x_ref, w1_ref, wh_ref, w5_ref, b_ref, out_ref, *act_refs):
    """Fused 5-layer MLP. x_ref is f32; all matmuls are bf16 x bf16 -> f32 on the MXU."""
    with_acts = len(act_refs) == 4

    # In-kernel f32 -> bf16 cast (VPU work, free under the memory bottleneck).
    h = x_ref[...].astype(jnp.bfloat16)                              # (TB, 784)

    # Layer 1: (TB,784) @ (784,128)
    hf = jnp.dot(h, w1_ref[...], preferred_element_type=jnp.float32)
    hf = jnp.maximum(hf + b_ref[0:1, :], 0.0)                        # f32 bias + ReLU
    h = hf.astype(jnp.bfloat16)
    if with_acts:
        src = hf if act_refs[0].dtype == jnp.float32 else h
        act_refs[0][...] = src.astype(act_refs[0].dtype)

    # Layers 2-4: stacked hidden weights (3,128,128), statically unrolled.
    for li in range(3):
        hf = jnp.dot(h, wh_ref[li], preferred_element_type=jnp.float32)
        hf = jnp.maximum(hf + b_ref[li + 1:li + 2, :], 0.0)
        h = hf.astype(jnp.bfloat16)
        if with_acts:
            k = li + 1
            src = hf if act_refs[k].dtype == jnp.float32 else h
            act_refs[k][...] = src.astype(act_refs[k].dtype)

    # Output layer: (TB,128) @ (128,128) + bias row 4; logits stay f32.
    out = jnp.dot(h, w5_ref[...], preferred_element_type=jnp.float32) + b_ref[4:5, :]
    out_ref[...] = out.astype(out_ref.dtype)


def prepare_params(params, compute_dtype=jnp.bfloat16):
    """Pad feature dims to 128 lanes and pack:
       w1 (784,128) bf16, wh (3,128,128) bf16, w5 (128,128) bf16, b (8,128) f32 (rows 0..4)."""
    def pad_w(w, rows, cols):
        r, c = w.shape
        return jnp.pad(w, ((0, rows - r), (0, cols - c))).astype(compute_dtype)

    w1 = pad_w(params["w1"], IN_FEATURES, H_PAD)
    wh = jnp.stack([pad_w(params[f"w{i}"], H_PAD, H_PAD) for i in (2, 3, 4)], axis=0)
    w5 = pad_w(params["w5"], H_PAD, O_PAD)

    biases = jnp.zeros((8, H_PAD), jnp.float32)
    for i in range(5):
        b = params[f"b{i + 1}"].reshape(-1).astype(jnp.float32)
        biases = biases.at[i, : b.shape[0]].set(b)

    return {"w1": w1, "wh": wh, "w5": w5, "b": biases}


def _choose_tb(B, tb):
    """Batch tile: multiple of 16 (bf16 sublane packing); split into >=2 grid steps when the
    batch is large enough so v7x megacore sharding has work for both TensorCores."""
    b16 = _round_up(max(B, 1), 16)
    TB = _round_up(min(tb, b16), 16)
    if b16 <= TB and b16 >= 32:
        TB = _round_up((b16 + 1) // 2, 16)
    return TB


@functools.partial(jax.jit, static_argnames=("tb", "return_activations", "act_dtype"))
def _mlp_forward_prepared(x, pp, *, tb=1024, return_activations=True,
                          act_dtype=jnp.bfloat16):
    """x: (B, 784) float32. pp: output of prepare_params."""
    B = x.shape[0]
    TB = _choose_tb(B, tb)
    B_pad = _round_up(_round_up(B, 16), TB)
    if B_pad != B:
        x = jnp.pad(x, ((0, B_pad - B), (0, 0)))      # fuses under jit; rows sliced off below

    grid = (B_pad // TB,)
    row = lambda i: (i, 0)

    in_specs = [
        pl.BlockSpec((TB, IN_FEATURES), row),                         # x tile (f32)
        pl.BlockSpec((IN_FEATURES, H_PAD), lambda i: (0, 0)),         # w1   (resident)
        pl.BlockSpec((3, H_PAD, H_PAD), lambda i: (0, 0, 0)),         # w2..w4 (resident)
        pl.BlockSpec((H_PAD, O_PAD), lambda i: (0, 0)),               # w5   (resident)
        pl.BlockSpec((8, H_PAD), lambda i: (0, 0)),                   # biases (resident)
    ]

    out_shapes = [jax.ShapeDtypeStruct((B_pad, O_PAD), jnp.float32)]
    out_specs = [pl.BlockSpec((TB, O_PAD), row)]
    if return_activations:
        for _ in range(4):
            out_shapes.append(jax.ShapeDtypeStruct((B_pad, H_PAD), act_dtype))
            out_specs.append(pl.BlockSpec((TB, H_PAD), row))

    flops = 2 * B_pad * (IN_FEATURES * H_PAD + 3 * H_PAD * H_PAD + H_PAD * O_PAD)
    param_bytes = sum(int(v.size) * v.dtype.itemsize for v in pp.values())
    act_bytes = (4 * B_pad * H_PAD * jnp.dtype(act_dtype).itemsize
                 if return_activations else 0)
    bytes_accessed = (B_pad * IN_FEATURES * 4 + param_bytes
                      + B_pad * O_PAD * 4 + act_bytes)
    cost = pl.CostEstimate(flops=flops, transcendentals=0, bytes_accessed=bytes_accessed)

    fn = pl.pallas_call(
        _mlp_kernel,
        grid=grid,
        out_shape=tuple(out_shapes),
        in_specs=in_specs,
        out_specs=tuple(out_specs),
        compiler_params=pltpu.CompilerParams(
            dimension_semantics=("parallel",),        # megacore sharding on v7x
            vmem_limit_bytes=32 * 1024 * 1024,        # raise v5e's 16 MiB default scoped VMEM
        ),
        cost_estimate=cost,
    )
    outs = fn(x, pp["w1"], pp["wh"], pp["w5"], pp["b"])

    logits = outs[0][:B, :SIZE_OUT]
    if not return_activations:
        return logits
    acts = tuple(a[:B, :SIZE_HIDDEN] for a in outs[1:])   # bf16 by default (caller may cast)
    return (logits, *acts)


def make_mlp_forward(params, *, tb=1024, return_activations=True,
                     act_dtype=jnp.bfloat16):
    """Prepare (pad/cast/pack) parameters once; return a fast jitted forward."""
    pp = prepare_params(params)

    def forward(x):
        return _mlp_forward_prepared(x, pp, tb=tb,
                                     return_activations=return_activations,
                                     act_dtype=act_dtype)
    return forward


def mlp_forward(x, params, **kwargs):
    """Convenience path: re-packs params every call. Prefer make_mlp_forward for hot loops."""
    return _mlp_forward_prepared(x, prepare_params(params), **kwargs)


def init_params(key):
    """Deterministic init mimicking nn.Linear's U(-1/sqrt(fan_in), 1/sqrt(fan_in))."""
    dims = [(IN_FEATURES, SIZE_HIDDEN),
            (SIZE_HIDDEN, SIZE_HIDDEN),
            (SIZE_HIDDEN, SIZE_HIDDEN),
            (SIZE_HIDDEN, SIZE_HIDDEN),
            (SIZE_HIDDEN, SIZE_OUT)]
    params = {}
    keys = jax.random.split(key, 2 * len(dims))
    for i, (fan_in, fan_out) in enumerate(dims):
        bound = 1.0 / (fan_in ** 0.5)
        params[f"w{i + 1}"] = jax.random.uniform(
            keys[2 * i], (fan_in, fan_out), minval=-bound, maxval=bound, dtype=jnp.float32)
        params[f"b{i + 1}"] = jax.random.uniform(
            keys[2 * i + 1], (1, fan_out), minval=-bound, maxval=bound, dtype=jnp.float32)
    return params


def reference_forward_f32(x, params):
    """Pure-f32 JAX reference of the PyTorch forward."""
    h = x
    acts = []
    for i in range(1, 5):
        h = jnp.maximum(h @ params[f"w{i}"] + params[f"b{i}"], 0.0)
        acts.append(h)
    out = h @ params["w5"] + params["b5"]
    return (out, *acts)


def reference_forward_matched(x, params, compute_dtype=jnp.bfloat16):
    """Reference using the same bf16-operand / f32-accumulate math as the kernel."""
    h = x.astype(compute_dtype)
    acts = []
    for i in range(1, 5):
        hf = jnp.dot(h, params[f"w{i}"].astype(compute_dtype),
                     preferred_element_type=jnp.float32) + params[f"b{i}"]
        hf = jnp.maximum(hf, 0.0)
        acts.append(hf)
        h = hf.astype(compute_dtype)
    out = jnp.dot(h, params["w5"].astype(compute_dtype),
                  preferred_element_type=jnp.float32) + params["b5"]
    return (out, *acts)


if __name__ == "__main__":
    key = jax.random.PRNGKey(0)
    k_param, k_x = jax.random.split(key)
    params = init_params(k_param)
    forward = make_mlp_forward(params)          # params padded/packed once

    # Case 1: small batch -> single grid step.
    x = jax.random.normal(k_x, (8, IN_FEATURES), dtype=jnp.float32)
    outs = jax.block_until_ready(forward(x))
    refs_m = reference_forward_matched(x, params)
    refs_f = reference_forward_f32(x, params)

    # Logits: f32, tight tolerance vs matched-precision reference, loose vs pure f32.
    assert outs[0].shape == refs_f[0].shape, (outs[0].shape, refs_f[0].shape)
    assert jnp.allclose(outs[0], refs_m[0], atol=2e-3, rtol=2e-3), \
        float(jnp.abs(outs[0] - refs_m[0]).max())
    assert jnp.allclose(outs[0], refs_f[0], atol=5e-2, rtol=5e-2), \
        float(jnp.abs(outs[0] - refs_f[0]).max())
    # Activations: stored bf16 (per perf review) -> relaxed tolerance vs f32 reference.
    for o, rm in zip(outs[1:], refs_m[1:]):
        assert o.shape == rm.shape, (o.shape, rm.shape)
        assert o.dtype == jnp.bfloat16
        assert jnp.allclose(o.astype(jnp.float32), rm, atol=2e-2, rtol=2e-2), \
            float(jnp.abs(o.astype(jnp.float32) - rm).max())

    # Case 2: batch not a multiple of the tile -> multi-step grid with batch padding.
    x2 = jax.random.normal(jax.random.PRNGKey(1), (40, IN_FEATURES), dtype=jnp.float32)
    outs2 = jax.block_until_ready(mlp_forward(x2, params, tb=16))
    refs2 = reference_forward_matched(x2, params)
    assert jnp.allclose(outs2[0], refs2[0], atol=2e-3, rtol=2e-3), \
        float(jnp.abs(outs2[0] - refs2[0]).max())
    for o, r in zip(outs2[1:], refs2[1:]):
        assert o.shape == r.shape, (o.shape, r.shape)
        assert jnp.allclose(o.astype(jnp.float32), r, atol=2e-2, rtol=2e-2), \
            float(jnp.abs(o.astype(jnp.float32) - r).max())

    # Logits-only path (no activation HBM stores at all).
    logits_only = jax.block_until_ready(
        mlp_forward(x, params, return_activations=False))
    assert jnp.allclose(logits_only, refs_m[0], atol=2e-3, rtol=2e-3)

    print("KERNEL_OK")
</pallas_src>

<mosaic_0001>
module attributes {stable_mosaic.version = 11 : i64} {
  func.func @_mlp_kernel(%arg0: i32, %arg1: memref<16x784xf32, #tpu.memory_space<vmem>>, %arg2: memref<784x128xbf16, #tpu.memory_space<vmem>>, %arg3: memref<3x128x128xbf16, #tpu.memory_space<vmem>>, %arg4: memref<128x128xbf16, #tpu.memory_space<vmem>>, %arg5: memref<8x128xf32, #tpu.memory_space<vmem>>, %arg6: memref<16x128xf32, #tpu.memory_space<vmem>>, %arg7: memref<16x128xbf16, #tpu.memory_space<vmem>>, %arg8: memref<16x128xbf16, #tpu.memory_space<vmem>>, %arg9: memref<16x128xbf16, #tpu.memory_space<vmem>>, %arg10: memref<16x128xbf16, #tpu.memory_space<vmem>>) attributes {dimension_semantics = [#tpu.dimension_semantics<parallel>], iteration_bounds = array<i64: 1>, scalar_prefetch = 0 : i64, scratch_operands = 0 : i64, tpu.core_type = #tpu.core_type<tc>, window_params = [{transform_indices = @transform_0, window_bounds = array<i64: 16, 784>}, {pipeline_mode = #tpu.pipeline_mode<synchronous>, transform_indices = @transform_1, window_bounds = array<i64: 784, 128>}, {pipeline_mode = #tpu.pipeline_mode<synchronous>, transform_indices = @transform_2, window_bounds = array<i64: 3, 128, 128>}, {pipeline_mode = #tpu.pipeline_mode<synchronous>, transform_indices = @transform_3, window_bounds = array<i64: 128, 128>}, {pipeline_mode = #tpu.pipeline_mode<synchronous>, transform_indices = @transform_4, window_bounds = array<i64: 8, 128>}, {transform_indices = @transform_5, window_bounds = array<i64: 16, 128>}, {transform_indices = @transform_6, window_bounds = array<i64: 16, 128>}, {transform_indices = @transform_7, window_bounds = array<i64: 16, 128>}, {transform_indices = @transform_8, window_bounds = array<i64: 16, 128>}, {transform_indices = @transform_9, window_bounds = array<i64: 16, 128>}]} {
    %c0 = arith.constant 0 : index
    %c0_0 = arith.constant 0 : index
    %0 = vector.load %arg1[%c0, %c0_0] : memref<16x784xf32, #tpu.memory_space<vmem>>, vector<16x784xf32>
    %1 = arith.truncf %0 : vector<16x784xf32> to vector<16x784xbf16>
    %c0_1 = arith.constant 0 : index
    %c0_2 = arith.constant 0 : index
    %2 = vector.load %arg2[%c0_1, %c0_2] : memref<784x128xbf16, #tpu.memory_space<vmem>>, vector<784x128xbf16>
    %cst = arith.constant dense<0.000000e+00> : vector<16x128xf32>
    %3 = tpu.matmul %1, %2, %cst {dimension_numbers = #tpu.dot_dimension_numbers<[1], [0], [0], [1], [0, 0, 1, 1], [], []>} : vector<16x784xbf16>, vector<784x128xbf16>, vector<16x128xf32> -> vector<16x128xf32>
    %c0_3 = arith.constant 0 : index
    %c0_4 = arith.constant 0 : index
    %4 = vector.load %arg5[%c0_3, %c0_4] : memref<8x128xf32, #tpu.memory_space<vmem>>, vector<1x128xf32>
    %5 = vector.broadcast %4 : vector<1x128xf32> to vector<16x128xf32>
    %6 = arith.addf %3, %5 : vector<16x128xf32>
    %cst_5 = arith.constant 0.000000e+00 : f32
    %7 = vector.broadcast %cst_5 : f32 to vector<16x128xf32>
    %8 = arith.maximumf %6, %7 : vector<16x128xf32>
    %9 = arith.truncf %8 : vector<16x128xf32> to vector<16x128xbf16>
    %c0_6 = arith.constant 0 : index
    %c0_7 = arith.constant 0 : index
    %10 = vector.load %arg7[%c0_6, %c0_7] : memref<16x128xbf16, #tpu.memory_space<vmem>>, vector<16x128xbf16>
    tpu.vector_store %arg7[%c0_6, %c0_7], %9 {strides = array<i32>} : memref<16x128xbf16, #tpu.memory_space<vmem>>, vector<16x128xbf16>,
    %c0_8 = arith.constant 0 : index
    %c0_9 = arith.constant 0 : index
    %c0_10 = arith.constant 0 : index
    %11 = vector.load %arg3[%c0_8, %c0_9, %c0_10] : memref<3x128x128xbf16, #tpu.memory_space<vmem>>, vector<1x128x128xbf16>
    %12 = vector.shape_cast %11 : vector<1x128x128xbf16> to vector<128x128xbf16>
    %cst_11 = arith.constant dense<0.000000e+00> : vector<16x128xf32>
    %13 = tpu.matmul %9, %12, %cst_11 {dimension_numbers = #tpu.dot_dimension_numbers<[1], [0], [0], [1], [0, 0, 1, 1], [], []>} : vector<16x128xbf16>, vector<128x128xbf16>, vector<16x128xf32> -> vector<16x128xf32>
    %c1 = arith.constant 1 : index
    %c0_12 = arith.constant 0 : index
    %14 = vector.load %arg5[%c1, %c0_12] : memref<8x128xf32, #tpu.memory_space<vmem>>, vector<1x128xf32>
    %15 = vector.broadcast %14 : vector<1x128xf32> to vector<16x128xf32>
    %16 = arith.addf %13, %15 : vector<16x128xf32>
    %cst_13 = arith.constant 0.000000e+00 : f32
    %17 = vector.broadcast %cst_13 : f32 to vector<16x128xf32>
    %18 = arith.maximumf %16, %17 : vector<16x128xf32>
    %19 = arith.truncf %18 : vector<16x128xf32> to vector<16x128xbf16>
    %c0_14 = arith.constant 0 : index
    %c0_15 = arith.constant 0 : index
    %20 = vector.load %arg8[%c0_14, %c0_15] : memref<16x128xbf16, #tpu.memory_space<vmem>>, vector<16x128xbf16>
    tpu.vector_store %arg8[%c0_14, %c0_15], %19 {strides = array<i32>} : memref<16x128xbf16, #tpu.memory_space<vmem>>, vector<16x128xbf16>,
    %c1_16 = arith.constant 1 : index
    %c0_17 = arith.constant 0 : index
    %c0_18 = arith.constant 0 : index
    %21 = vector.load %arg3[%c1_16, %c0_17, %c0_18] : memref<3x128x128xbf16, #tpu.memory_space<vmem>>, vector<1x128x128xbf16>
    %22 = vector.shape_cast %21 : vector<1x128x128xbf16> to vector<128x128xbf16>
    %cst_19 = arith.constant dense<0.000000e+00> : vector<16x128xf32>
    %23 = tpu.matmul %19, %22, %cst_19 {dimension_numbers = #tpu.dot_dimension_numbers<[1], [0], [0], [1], [0, 0, 1, 1], [], []>} : vector<16x128xbf16>, vector<128x128xbf16>, vector<16x128xf32> -> vector<16x128xf32>
    %c2 = arith.constant 2 : index
    %c0_20 = arith.constant 0 : index
    %24 = vector.load %arg5[%c2, %c0_20] : memref<8x128xf32, #tpu.memory_space<vmem>>, vector<1x128xf32>
    %25 = vector.broadcast %24 : vector<1x128xf32> to vector<16x128xf32>
    %26 = arith.addf %23, %25 : vector<16x128xf32>
    %cst_21 = arith.constant 0.000000e+00 : f32
    %27 = vector.broadcast %cst_21 : f32 to vector<16x128xf32>
    %28 = arith.maximumf %26, %27 : vector<16x128xf32>
    %29 = arith.truncf %28 : vector<16x128xf32> to vector<16x128xbf16>
    %c0_22 = arith.constant 0 : index
    %c0_23 = arith.constant 0 : index
    %30 = vector.load %arg9[%c0_22, %c0_23] : memref<16x128xbf16, #tpu.memory_space<vmem>>, vector<16x128xbf16>
    tpu.vector_store %arg9[%c0_22, %c0_23], %29 {strides = array<i32>} : memref<16x128xbf16, #tpu.memory_space<vmem>>, vector<16x128xbf16>,
    %c2_24 = arith.constant 2 : index
    %c0_25 = arith.constant 0 : index
    %c0_26 = arith.constant 0 : index
    %31 = vector.load %arg3[%c2_24, %c0_25, %c0_26] : memref<3x128x128xbf16, #tpu.memory_space<vmem>>, vector<1x128x128xbf16>
    %32 = vector.shape_cast %31 : vector<1x128x128xbf16> to vector<128x128xbf16>
    %cst_27 = arith.constant dense<0.000000e+00> : vector<16x128xf32>
    %33 = tpu.matmul %29, %32, %cst_27 {dimension_numbers = #tpu.dot_dimension_numbers<[1], [0], [0], [1], [0, 0, 1, 1], [], []>} : vector<16x128xbf16>, vector<128x128xbf16>, vector<16x128xf32> -> vector<16x128xf32>
    %c3 = arith.constant 3 : index
    %c0_28 = arith.constant 0 : index
    %34 = vector.load %arg5[%c3, %c0_28] : memref<8x128xf32, #tpu.memory_space<vmem>>, vector<1x128xf32>
    %35 = vector.broadcast %34 : vector<1x128xf32> to vector<16x128xf32>
    %36 = arith.addf %33, %35 : vector<16x128xf32>
    %cst_29 = arith.constant 0.000000e+00 : f32
    %37 = vector.broadcast %cst_29 : f32 to vector<16x128xf32>
    %38 = arith.maximumf %36, %37 : vector<16x128xf32>
    %39 = arith.truncf %38 : vector<16x128xf32> to vector<16x128xbf16>
    %c0_30 = arith.constant 0 : index
    %c0_31 = arith.constant 0 : index
    %40 = vector.load %arg10[%c0_30, %c0_31] : memref<16x128xbf16, #tpu.memory_space<vmem>>, vector<16x128xbf16>
    tpu.vector_store %arg10[%c0_30, %c0_31], %39 {strides = array<i32>} : memref<16x128xbf16, #tpu.memory_space<vmem>>, vector<16x128xbf16>,
    %c0_32 = arith.constant 0 : index
    %c0_33 = arith.constant 0 : index
    %41 = vector.load %arg4[%c0_32, %c0_33] : memref<128x128xbf16, #tpu.memory_space<vmem>>, vector<128x128xbf16>
    %cst_34 = arith.constant dense<0.000000e+00> : vector<16x128xf32>
    %42 = tpu.matmul %39, %41, %cst_34 {dimension_numbers = #tpu.dot_dimension_numbers<[1], [0], [0], [1], [0, 0, 1, 1], [], []>} : vector<16x128xbf16>, vector<128x128xbf16>, vector<16x128xf32> -> vector<16x128xf32>
    %c4 = arith.constant 4 : index
    %c0_35 = arith.constant 0 : index
    %43 = vector.load %arg5[%c4, %c0_35] : memref<8x128xf32, #tpu.memory_space<vmem>>, vector<1x128xf32>
    %44 = vector.broadcast %43 : vector<1x128xf32> to vector<16x128xf32>
    %45 = arith.addf %42, %44 : vector<16x128xf32>
    %c0_36 = arith.constant 0 : index
    %c0_37 = arith.constant 0 : index
    %46 = vector.load %arg6[%c0_36, %c0_37] : memref<16x128xf32, #tpu.memory_space<vmem>>, vector<16x128xf32>
    tpu.vector_store %arg6[%c0_36, %c0_37], %45 {strides = array<i32>} : memref<16x128xf32, #tpu.memory_space<vmem>>, vector<16x128xf32>,
    return
  }
  func.func @transform_0(%arg0: i32) -> (i32, i32) {
    %c0_i32 = arith.constant 0 : i32
    %c0_i32_0 = arith.constant 0 : i32
    return %arg0, %c0_i32 : i32, i32
  }
  func.func @transform_1(%arg0: i32) -> (i32, i32) {
    %c0_i32 = arith.constant 0 : i32
    %c0_i32_0 = arith.constant 0 : i32
    %c0_i32_1 = arith.constant 0 : i32
    return %c0_i32, %c0_i32_0 : i32, i32
  }
  func.func @transform_2(%arg0: i32) -> (i32, i32, i32) {
    %c0_i32 = arith.constant 0 : i32
    %c0_i32_0 = arith.constant 0 : i32
    %c0_i32_1 = arith.constant 0 : i32
    %c0_i32_2 = arith.constant 0 : i32
    return %c0_i32, %c0_i32_0, %c0_i32_1 : i32, i32, i32
  }
  func.func @transform_3(%arg0: i32) -> (i32, i32) {
    %c0_i32 = arith.constant 0 : i32
    %c0_i32_0 = arith.constant 0 : i32
    %c0_i32_1 = arith.constant 0 : i32
    return %c0_i32, %c0_i32_0 : i32, i32
  }
  func.func @transform_4(%arg0: i32) -> (i32, i32) {
    %c0_i32 = arith.constant 0 : i32
    %c0_i32_0 = arith.constant 0 : i32
    %c0_i32_1 = arith.constant 0 : i32
    return %c0_i32, %c0_i32_0 : i32, i32
  }
  func.func @transform_5(%arg0: i32) -> (i32, i32) {
    %c0_i32 = arith.constant 0 : i32
    %c0_i32_0 = arith.constant 0 : i32
    return %arg0, %c0_i32 : i32, i32
  }
  func.func @transform_6(%arg0: i32) -> (i32, i32) {
    %c0_i32 = arith.constant 0 : i32
    %c0_i32_0 = arith.constant 0 : i32
    return %arg0, %c0_i32 : i32, i32
  }
  func.func @transform_7(%arg0: i32) -> (i32, i32) {
    %c0_i32 = arith.constant 0 : i32
    %c0_i32_0 = arith.constant 0 : i32
    return %arg0, %c0_i32 : i32, i32
  }
  func.func @transform_8(%arg0: i32) -> (i32, i32) {
    %c0_i32 = arith.constant 0 : i32
    %c0_i32_0 = arith.constant 0 : i32
    return %arg0, %c0_i32 : i32, i32
  }
  func.func @transform_9(%arg0: i32) -> (i32, i32) {
    %c0_i32 = arith.constant 0 : i32
    %c0_i32_0 = arith.constant 0 : i32
    return %arg0, %c0_i32 : i32, i32
  }
}

</mosaic_0001>

<llo_original>
// kernel: _mlp_forward_prepared.1
$region0: #{_mlp_forward_prepared.1}
  #allocation0 [shape = 'u32[]', space=smem, size = 0x4, offset = 0x4, fixed_abs, tag = 'smem constant byte address 0x4 - core index']
  #allocation1 [shape = 'u32[144,128]{1,0:T(1,128)}', space=vmem, size = 0x12000, scoped, tag = 'internal scratch']
  %s0 = inlined_call_operand.vmem [shape: f32[16,784], index: 0, kind: input, shape index: {}]
  %s1 = inlined_call_operand.hbm [shape: bf16[784,128], index: 1, kind: input, shape index: {}]
  %s2 = inlined_call_operand.hbm [shape: bf16[3,128,128], index: 2, kind: input, shape index: {}]
  %s3 = inlined_call_operand.vmem [shape: bf16[128,128], index: 3, kind: input, shape index: {}]
  %s4 = inlined_call_operand.vmem [shape: f32[8,128], index: 4, kind: input, shape index: {}]
  %s5 = inlined_call_operand.vmem [shape: f32[16,128], index: 5, kind: output, shape index: {0}]
  %s6 = inlined_call_operand.vmem [shape: bf16[16,128], index: 6, kind: output, shape index: {1}]
  %s7 = inlined_call_operand.vmem [shape: bf16[16,128], index: 7, kind: output, shape index: {2}]
  %s8 = inlined_call_operand.vmem [shape: bf16[16,128], index: 8, kind: output, shape index: {3}]
  %s9 = inlined_call_operand.vmem [shape: bf16[16,128], index: 9, kind: output, shape index: {4}]
  %10 = xla_tuple %s5, %s6, %s7, %s8, %s9
  %s11 = sld [smem:[#allocation0]]
  $region70: #{_mlp_forward_prepared.1} parent=0
    _
  %s13 = ssub.s32 1, %s11
  %s14 = scalar_select 0, %s13, %s11
  $region1: #{_mlp_forward_prepared.1} parent=0
    #allocation2 [shape = 'u8[200704]{0}', space=vmem, size = 0x31000, scoped, tag = 'input window, operand 1, single buffered']
    #allocation3 [shape = 's32[1]{0}', space=sflag, size = 0x4, scoped, tag = 'scoped memory for _mlp_forward_prepared.1']
    #allocation4 [shape = 'u8[98304]{0}', space=vmem, size = 0x18000, scoped, tag = 'input window, operand 2, single buffered']
    #allocation5 [shape = 's32[1]{0}', space=sflag, size = 0x4, scoped, tag = 'scoped memory for _mlp_forward_prepared.1']
    %15 = vsyncpa [#allocation3], 0
    %16 = vsyncpa [#allocation5], 0
    // Predicated region
    $region2: #{_mlp_forward_prepared.1} parent=1 // pred_check
      _
    $region3: #{_mlp_forward_prepared.1} parent=1 // pred_check_branch
      %18 = sbr.rel (0) target = $region5
    $region4: #{_mlp_forward_prepared.1} parent=1 // pred_region
      _
    $region5: #{_mlp_forward_prepared.1} parent=1 // pred_fallthru
      _
    // Predicated region
    $region6: #{_mlp_forward_prepared.1} parent=1 // pred_check
      _
    $region7: #{_mlp_forward_prepared.1} parent=1 // pred_check_branch
      %20 = sbr.rel (0) target = $region9
    $region8: #{_mlp_forward_prepared.1} parent=1 // pred_region
      %s22 = ssub.s32 6272, 6272
      %23 = vsyncadd [#allocation3], %s22
      %s24 = sshll.u32 [#allocation2], 4
      %s25 = int_to_ptr.vmem [resolvable:$true] %s24
      %30 = dma.hbm_to_vmem [thread:$0]  %s1, 6272, %s25, [#allocation3], 64, 64, 4
    $region9: #{_mlp_forward_prepared.1} parent=1 // pred_fallthru
      _
    // Predicated region
    $region10: #{_mlp_forward_prepared.1} parent=1 // pred_check
      _
    $region11: #{_mlp_forward_prepared.1} parent=1 // pred_check_branch
      %32 = sbr.rel (0) target = $region13
    $region12: #{_mlp_forward_prepared.1} parent=1 // pred_region
      %s34 = ssub.s32 3072, 3072
      %35 = vsyncadd [#allocation5], %s34
      %s36 = sshll.u32 [#allocation4], 4
      %s37 = int_to_ptr.vmem [resolvable:$true] %s36
      %42 = dma.hbm_to_vmem [thread:$0]  %s2, 3072, %s37, [#allocation5], 64, 64, 4
    $region13: #{_mlp_forward_prepared.1} parent=1 // pred_fallthru
      _
    // Predicated region
    $region14: #{_mlp_forward_prepared.1} parent=1 // pred_check
      _
    $region15: #{_mlp_forward_prepared.1} parent=1 // pred_check_branch
      %44 = sbr.rel (0) target = $region17
    $region16: #{_mlp_forward_prepared.1} parent=1 // pred_region
      _
    $region17: #{_mlp_forward_prepared.1} parent=1 // pred_fallthru
      _
    // Predicated region
    $region18: #{_mlp_forward_prepared.1} parent=1 // pred_check
      _
    $region19: #{_mlp_forward_prepared.1} parent=1 // pred_check_branch
      %46 = sbr.rel (0) target = $region21
    $region20: #{_mlp_forward_prepared.1} parent=1 // pred_region
      _
    $region21: #{_mlp_forward_prepared.1} parent=1 // pred_fallthru
      _
    // Predicated region
    $region22: #{_mlp_forward_prepared.1} parent=1 // pred_check
      _
    $region23: #{_mlp_forward_prepared.1} parent=1 // pred_check_branch
      %48 = sbr.rel (0) target = $region25
    $region24: #{_mlp_forward_prepared.1} parent=1 // pred_region
      %49 = dma.done [#allocation3], 6272
    $region25: #{_mlp_forward_prepared.1} parent=1 // pred_fallthru
      _
    // Predicated region
    $region26: #{_mlp_forward_prepared.1} parent=1 // pred_check
      _
    $region27: #{_mlp_forward_prepared.1} parent=1 // pred_check_branch
      %51 = sbr.rel (0) target = $region29
    $region28: #{_mlp_forward_prepared.1} parent=1 // pred_region
      %52 = dma.done [#allocation5], 3072
    $region29: #{_mlp_forward_prepared.1} parent=1 // pred_fallthru
      _
    %v54 = vld [vmem:[%s0] sm:$0xff]
    %v55 = vld [vmem:[%s0 + $0x8] sm:$0xff]
    %v56 = vld [vmem:[%s0 + $0x10] sm:$0xff]
    %v57 = vld [vmem:[%s0 + $0x18] sm:$0xff]
    %v58 = vld [vmem:[%s0 + $0x20] sm:$0xff]
    %v59 = vld [vmem:[%s0 + $0x28] sm:$0xff]
    %v60 = vld [vmem:[%s0 + $0x30] sm:$0xff]
    %v61 = vld [vmem:[%s0 + $0x38] sm:$0xff]
    %v62 = vld [vmem:[%s0 + $0x40] sm:$0xff]
    %v63 = vld [vmem:[%s0 + $0x48] sm:$0xff]
    %v64 = vld [vmem:[%s0 + $0x50] sm:$0xff]
    %v65 = vld [vmem:[%s0 + $0x58] sm:$0xff]
    %v66 = vld [vmem:[%s0 + $0x60] sm:$0xff]
    %v67 = vld [vmem:[%s0 + $0x68] sm:$0xff]
    %v68 = vpack.c.bf16 %v61, %v54
    %v69 = vpack.c.bf16 %v62, %v55
    %v70 = vpack.c.bf16 %v63, %v56
    %v71 = vpack.c.bf16 %v64, %v57
    %v72 = vpack.c.bf16 %v65, %v58
    %v73 = vpack.c.bf16 %v66, %v59
    %v74 = vpack.c.bf16 %v67, %v60
    %v75 = vld [vmem:[#allocation2] sm:$0xf]
    %v76 = vld [vmem:[#allocation2 + $0x4] sm:$0xf]
    %v77 = vld [vmem:[#allocation2 + $0x8] sm:$0xf]
    %v78 = vld [vmem:[#allocation2 + $0xc] sm:$0xf]
    %v79 = vld [vmem:[#allocation2 + $0x10] sm:$0xf]
    %v80 = vld [vmem:[#allocation2 + $0x14] sm:$0xf]
    %v81 = vld [vmem:[#allocation2 + $0x18] sm:$0xf]
    %v82 = vld [vmem:[#allocation2 + $0x1c] sm:$0xf]
    %v83 = vld [vmem:[#allocation2 + $0x20] sm:$0xf]
    %v84 = vld [vmem:[#allocation2 + $0x24] sm:$0xf]
    %v85 = vld [vmem:[#allocation2 + $0x28] sm:$0xf]
    %v86 = vld [vmem:[#allocation2 + $0x2c] sm:$0xf]
    %v87 = vld [vmem:[#allocation2 + $0x30] sm:$0xf]
    %v88 = vld [vmem:[#allocation2 + $0x34] sm:$0xf]
    %v89 = vld [vmem:[#allocation2 + $0x38] sm:$0xf]
    %v90 = vld [vmem:[#allocation2 + $0x3c] sm:$0xf]
    %v91 = vld [vmem:[#allocation2 + $0x40] sm:$0xf]
    %v92 = vld [vmem:[#allocation2 + $0x44] sm:$0xf]
    %v93 = vld [vmem:[#allocation2 + $0x48] sm:$0xf]
    %v94 = vld [vmem:[#allocation2 + $0x4c] sm:$0xf]
    %v95 = vld [vmem:[#allocation2 + $0x50] sm:$0xf]
    %v96 = vld [vmem:[#allocation2 + $0x54] sm:$0xf]
    %v97 = vld [vmem:[#allocation2 + $0x58] sm:$0xf]
    %v98 = vld [vmem:[#allocation2 + $0x5c] sm:$0xf]
    %v99 = vld [vmem:[#allocation2 + $0x60] sm:$0xf]
    %v100 = vld [vmem:[#allocation2 + $0x64] sm:$0xf]
    %v101 = vld [vmem:[#allocation2 + $0x68] sm:$0xf]
    %v102 = vld [vmem:[#allocation2 + $0x6c] sm:$0xf]
    %v103 = vld [vmem:[#allocation2 + $0x70] sm:$0xf]
    %v104 = vld [vmem:[#allocation2 + $0x74] sm:$0xf]
    %v105 = vld [vmem:[#allocation2 + $0x78] sm:$0xf]
    %v106 = vld [vmem:[#allocation2 + $0x7c] sm:$0xf]
    %v107 = vld [vmem:[#allocation2 + $0x80] sm:$0xf]
    %v108 = vld [vmem:[#allocation2 + $0x84] sm:$0xf]
    %v109 = vld [vmem:[#allocation2 + $0x88] sm:$0xf]
    %v110 = vld [vmem:[#allocation2 + $0x8c] sm:$0xf]
    %v111 = vld [vmem:[#allocation2 + $0x90] sm:$0xf]
    %v112 = vld [vmem:[#allocation2 + $0x94] sm:$0xf]
    %v113 = vld [vmem:[#allocation2 + $0x98] sm:$0xf]
    %v114 = vld [vmem:[#allocation2 + $0x9c] sm:$0xf]
    %v115 = vld [vmem:[#allocation2 + $0xa0] sm:$0xf]
    %v116 = vld [vmem:[#allocation2 + $0xa4] sm:$0xf]
    %v117 = vld [vmem:[#allocation2 + $0xa8] sm:$0xf]
    %v118 = vld [vmem:[#allocation2 + $0xac] sm:$0xf]
    %v119 = vld [vmem:[#allocation2 + $0xb0] sm:$0xf]
    %v120 = vld [vmem:[#allocation2 + $0xb4] sm:$0xf]
    %v121 = vld [vmem:[#allocation2 + $0xb8] sm:$0xf]
    %v122 = vld [vmem:[#allocation2 + $0xbc] sm:$0xf]
    %v123 = vld [vmem:[#allocation2 + $0xc0] sm:$0xf]
    %v124 = vld [vmem:[#allocation2 + $0xc4] sm:$0xf]
    %v125 = vld [vmem:[#allocation2 + $0xc8] sm:$0xf]
    %v126 = vld [vmem:[#allocation2 + $0xcc] sm:$0xf]
    %v127 = vld [vmem:[#allocation2 + $0xd0] sm:$0xf]
    %v128 = vld [vmem:[#allocation2 + $0xd4] sm:$0xf]
    %v129 = vld [vmem:[#allocation2 + $0xd8] sm:$0xf]
    %v130 = vld [vmem:[#allocation2 + $0xdc] sm:$0xf]
    %v131 = vld [vmem:[#allocation2 + $0xe0] sm:$0xf]
    %v132 = vld [vmem:[#allocation2 + $0xe4] sm:$0xf]
    %v133 = vld [vmem:[#allocation2 + $0xe8] sm:$0xf]
    %v134 = vld [vmem:[#allocation2 + $0xec] sm:$0xf]
    %v135 = vld [vmem:[#allocation2 + $0xf0] sm:$0xf]
    %v136 = vld [vmem:[#allocation2 + $0xf4] sm:$0xf]
    %v137 = vld [vmem:[#allocation2 + $0xf8] sm:$0xf]
    %v138 = vld [vmem:[#allocation2 + $0xfc] sm:$0xf]
    %v139 = vld [vmem:[#allocation2 + $0x100] sm:$0xf]
    %v140 = vld [vmem:[#allocation2 + $0x104] sm:$0xf]
    %v141 = vld [vmem:[#allocation2 + $0x108] sm:$0xf]
    %v142 = vld [vmem:[#allocation2 + $0x10c] sm:$0xf]
    %v143 = vld [vmem:[#allocation2 + $0x110] sm:$0xf]
    %v144 = vld [vmem:[#allocation2 + $0x114] sm:$0xf]
    %v145 = vld [vmem:[#allocation2 + $0x118] sm:$0xf]
    %v146 = vld [vmem:[#allocation2 + $0x11c] sm:$0xf]
    %v147 = vld [vmem:[#allocation2 + $0x120] sm:$0xf]
    %v148 = vld [vmem:[#allocation2 + $0x124] sm:$0xf]
    %v149 = vld [vmem:[#allocation2 + $0x128] sm:$0xf]
    %v150 = vld [vmem:[#allocation2 + $0x12c] sm:$0xf]
    %v151 = vld [vmem:[#allocation2 + $0x130] sm:$0xf]
    %v152 = vld [vmem:[#allocation2 + $0x134] sm:$0xf]
    %v153 = vld [vmem:[#allocation2 + $0x138] sm:$0xf]
    %v154 = vld [vmem:[#allocation2 + $0x13c] sm:$0xf]
    %v155 = vld [vmem:[#allocation2 + $0x140] sm:$0xf]
    %v156 = vld [vmem:[#allocation2 + $0x144] sm:$0xf]
    %v157 = vld [vmem:[#allocation2 + $0x148] sm:$0xf]
    %v158 = vld [vmem:[#allocation2 + $0x14c] sm:$0xf]
    %v159 = vld [vmem:[#allocation2 + $0x150] sm:$0xf]
    %v160 = vld [vmem:[#allocation2 + $0x154] sm:$0xf]
    %v161 = vld [vmem:[#allocation2 + $0x158] sm:$0xf]
    %v162 = vld [vmem:[#allocation2 + $0x15c] sm:$0xf]
    %v163 = vld [vmem:[#allocation2 + $0x160] sm:$0xf]
    %v164 = vld [vmem:[#allocation2 + $0x164] sm:$0xf]
    %v165 = vld [vmem:[#allocation2 + $0x168] sm:$0xf]
    %v166 = vld [vmem:[#allocation2 + $0x16c] sm:$0xf]
    %v167 = vld [vmem:[#allocation2 + $0x170] sm:$0xf]
    %v168 = vld [vmem:[#allocation2 + $0x174] sm:$0xf]
    %v169 = vld [vmem:[#allocation2 + $0x178] sm:$0xf]
    %v170 = vld [vmem:[#allocation2 + $0x17c] sm:$0xf]
    %v171 = vld [vmem:[#allocation2 + $0x180] sm:$0xf]
    %v172 = vld [vmem:[#allocation2 + $0x184] sm:$0xf]
    %v173 = vld [vmem:[%s4] sm:$0x1]
    %v174 = vlaneseq
    %v175 = vshrl.u32 %v174, 7
    %v176 = vsub.s32 0, %v175
    %v177 = vrot.slane %v173, %v176
    %v276 = vunpack.c.l.b16 %v75
    %v277 = vunpack.c.l.b16 %v76
    %v278 = vunpack.c.l.b16 %v77
    %v279 = vunpack.c.l.b16 %v78
    %v280 = vunpack.c.l.b16 %v79
    %v281 = vunpack.c.l.b16 %v80
    %v282 = vunpack.c.l.b16 %v81
    %v283 = vunpack.c.l.b16 %v82
    %v284 = vunpack.c.l.b16 %v83
    %v285 = vunpack.c.l.b16 %v84
    %v286 = vunpack.c.l.b16 %v85
    %v287 = vunpack.c.l.b16 %v86
    %v288 = vunpack.c.l.b16 %v87
    %v289 = vunpack.c.l.b16 %v88
    %v290 = vunpack.c.l.b16 %v89
    %v291 = vunpack.c.l.b16 %v90
    %v292 = vunpack.c.l.b16 %v91
    %v293 = vunpack.c.l.b16 %v92
    %v294 = vunpack.c.l.b16 %v93
    %v295 = vunpack.c.l.b16 %v94
    %v296 = vunpack.c.l.b16 %v95
    %v297 = vunpack.c.l.b16 %v96
    %v298 = vunpack.c.l.b16 %v97
    %v299 = vunpack.c.l.b16 %v98
    %v300 = vunpack.c.l.b16 %v99
    %v301 = vunpack.c.l.b16 %v100
    %v302 = vunpack.c.l.b16 %v101
    %v303 = vunpack.c.l.b16 %v102
    %v304 = vunpack.c.l.b16 %v103
    %v305 = vunpack.c.l.b16 %v104
    %v306 = vunpack.c.l.b16 %v105
    %v307 = vunpack.c.l.b16 %v106
    %v308 = vunpack.c.l.b16 %v107
    %v309 = vunpack.c.l.b16 %v108
    %v310 = vunpack.c.l.b16 %v109
    %v311 = vunpack.c.l.b16 %v110
    %v312 = vunpack.c.l.b16 %v111
    %v313 = vunpack.c.l.b16 %v112
    %v314 = vunpack.c.l.b16 %v113
    %v315 = vunpack.c.l.b16 %v114
    %v316 = vunpack.c.l.b16 %v115
    %v317 = vunpack.c.l.b16 %v116
    %v318 = vunpack.c.l.b16 %v117
    %v319 = vunpack.c.l.b16 %v118
    %v320 = vunpack.c.l.b16 %v119
    %v321 = vunpack.c.l.b16 %v120
    %v322 = vunpack.c.l.b16 %v121
    %v323 = vunpack.c.l.b16 %v122
    %v324 = vunpack.c.l.b16 %v123
    %v325 = vunpack.c.l.b16 %v124
    %v326 = vunpack.c.l.b16 %v125
    %v327 = vunpack.c.l.b16 %v126
    %v328 = vunpack.c.l.b16 %v127
    %v329 = vunpack.c.l.b16 %v128
    %v330 = vunpack.c.l.b16 %v129
    %v331 = vunpack.c.l.b16 %v130
    %v332 = vunpack.c.l.b16 %v131
    %v333 = vunpack.c.l.b16 %v132
    %v334 = vunpack.c.l.b16 %v133
    %v335 = vunpack.c.l.b16 %v134
    %v336 = vunpack.c.l.b16 %v135
    %v337 = vunpack.c.l.b16 %v136
    %v338 = vunpack.c.l.b16 %v137
    %v339 = vunpack.c.l.b16 %v138
    %v340 = vunpack.c.l.b16 %v139
    %v341 = vunpack.c.l.b16 %v140
    %v342 = vunpack.c.l.b16 %v141
    %v343 = vunpack.c.l.b16 %v142
    %v344 = vunpack.c.l.b16 %v143
    %v345 = vunpack.c.l.b16 %v144
    %v346 = vunpack.c.l.b16 %v145
    %v347 = vunpack.c.l.b16 %v146
    %v348 = vunpack.c.l.b16 %v147
    %v349 = vunpack.c.l.b16 %v148
    %v350 = vunpack.c.l.b16 %v149
    %v351 = vunpack.c.l.b16 %v150
    %v352 = vunpack.c.l.b16 %v151
    %v353 = vunpack.c.l.b16 %v152
    %v354 = vunpack.c.l.b16 %v153
    %v355 = vunpack.c.l.b16 %v154
    %v356 = vunpack.c.l.b16 %v155
    %v357 = vunpack.c.l.b16 %v156
    %v358 = vunpack.c.l.b16 %v157
    %v359 = vunpack.c.l.b16 %v158
    %v360 = vunpack.c.l.b16 %v159
    %v361 = vunpack.c.l.b16 %v160
    %v362 = vunpack.c.l.b16 %v161
    %v363 = vunpack.c.l.b16 %v162
    %v364 = vunpack.c.l.b16 %v163
    %v365 = vunpack.c.l.b16 %v164
    %v366 = vunpack.c.l.b16 %v165
    %v367 = vunpack.c.l.b16 %v166
    %v368 = vunpack.c.l.b16 %v167
    %v369 = vunpack.c.l.b16 %v168
    %v370 = vunpack.c.l.b16 %v169
    %v371 = vunpack.c.l.b16 %v170
    %v372 = vunpack.c.l.b16 %v171
    %v373 = vunpack.c.l.b16 %v172
    %v374 = vpack.c.b16 %v277, %v276
    %v375 = vpack.c.b16 %v279, %v278
    %v376 = vpack.c.b16 %v281, %v280
    %v377 = vpack.c.b16 %v283, %v282
    %v378 = vpack.c.b16 %v285, %v284
    %v379 = vpack.c.b16 %v287, %v286
    %v380 = vpack.c.b16 %v289, %v288
    %v381 = vpack.c.b16 %v291, %v290
    %v382 = vpack.c.b16 %v293, %v292
    %v383 = vpack.c.b16 %v295, %v294
    %v384 = vpack.c.b16 %v297, %v296
    %v385 = vpack.c.b16 %v299, %v298
    %v386 = vpack.c.b16 %v301, %v300
    %v387 = vpack.c.b16 %v303, %v302
    %v388 = vpack.c.b16 %v305, %v304
    %v389 = vpack.c.b16 %v307, %v306
    %v390 = vpack.c.b16 %v309, %v308
    %v391 = vpack.c.b16 %v311, %v310
    %v392 = vpack.c.b16 %v313, %v312
    %v393 = vpack.c.b16 %v315, %v314
    %v394 = vpack.c.b16 %v317, %v316
    %v395 = vpack.c.b16 %v319, %v318
    %v396 = vpack.c.b16 %v321, %v320
    %v397 = vpack.c.b16 %v323, %v322
    %v398 = vpack.c.b16 %v325, %v324
    %v399 = vpack.c.b16 %v327, %v326
    %v400 = vpack.c.b16 %v329, %v328
    %v401 = vpack.c.b16 %v331, %v330
    %v402 = vpack.c.b16 %v333, %v332
    %v403 = vpack.c.b16 %v335, %v334
    %v404 = vpack.c.b16 %v337, %v336
    %v405 = vpack.c.b16 %v339, %v338
    %v406 = vpack.c.b16 %v341, %v340
    %v407 = vpack.c.b16 %v343, %v342
    %v408 = vpack.c.b16 %v345, %v344
    %v409 = vpack.c.b16 %v347, %v346
    %v410 = vpack.c.b16 %v349, %v348
    %v411 = vpack.c.b16 %v351, %v350
    %v412 = vpack.c.b16 %v353, %v352
    %v413 = vpack.c.b16 %v355, %v354
    %v414 = vpack.c.b16 %v357, %v356
    %v415 = vpack.c.b16 %v359, %v358
    %v416 = vpack.c.b16 %v361, %v360
    %v417 = vpack.c.b16 %v363, %v362
    %v418 = vpack.c.b16 %v365, %v364
    %v419 = vpack.c.b16 %v367, %v366
    %v420 = vpack.c.b16 %v369, %v368
    %v421 = vpack.c.b16 %v371, %v370
    %v422 = vpack.c.b16 %v373, %v372
    %vm472 = vcmask 130048
    %v474 = vsel %vm472, %v74, 0
    %476 = vmatprep.subr.bf16.mxu0 0
    %477 = vmatpush1.bf16.msra.mxu0 %v374
    %478 = vmatprep.subr.bf16.mxu0 0
    %479 = vmatpush1.bf16.msra.mxu0 %v375
    %480 = vmatprep.subr.bf16.mxu0 0
    %481 = vmatpush1.bf16.msra.mxu0 %v376
    %482 = vmatprep.subr.bf16.mxu0 0
    %483 = vmatpush1.bf16.msra.mxu0 %v377
    %484 = vmatprep.subr.bf16.mxu0 0
    %485 = vmatpush1.bf16.msra.mxu0 %v378
    %486 = vmatprep.subr.bf16.mxu0 0
    %487 = vmatpush1.bf16.msra.mxu0 %v379
    %488 = vmatprep.subr.bf16.mxu0 0
    %489 = vmatpush1.bf16.msra.mxu0 %v380
    %490 = vmatprep.subr.bf16.mxu0 0
    %491 = vmatpush1.bf16.msra.mxu0 %v381
    %492 = vmatprep.subr.bf16.mxu0 0
    %493 = vmatpush1.bf16.msra.mxu0 %v382
    %494 = vmatprep.subr.bf16.mxu0 0
    %495 = vmatpush1.bf16.msra.mxu0 %v383
    %496 = vmatprep.subr.bf16.mxu0 0
    %497 = vmatpush1.bf16.msra.mxu0 %v384
    %498 = vmatprep.subr.bf16.mxu0 0
    %499 = vmatpush1.bf16.msra.mxu0 %v385
    %500 = vmatprep.subr.bf16.mxu0 0
    %501 = vmatpush1.bf16.msra.mxu0 %v386
    %502 = vmatprep.subr.bf16.mxu0 0
    %503 = vmatpush1.bf16.msra.mxu0 %v387
    %504 = vmatprep.subr.bf16.mxu0 0
    %505 = vmatpush1.bf16.msra.mxu0 %v388
    %506 = vmatprep.subr.bf16.mxu0 0
    %507 = vmatpush1.bf16.msra.mxu0 %v389
    %508 = vmatprep.mubr.bf16.mxu0 %v69
    %509 = vmatmul.mubr.bf16.gmra.mrb[0].mxu0 %v68
    %v510 = vpop.f32.mrb[0].mxu0
    %v511 = vadd.f32 %v177, %v510
    %v512 = vpop.f32.mrb[0].mxu0
    %v513 = vpop.f32.mrb[0].mxu0
    %v514 = vadd.f32 %v177, %v513
    %v515 = vpop.f32.mrb[0].mxu0
    %516 = vdwg.mxu0
    %517 = vmatprep.subr.bf16.mxu0 0
    %518 = vmatpush1.bf16.msra.mxu0 %v390
    %519 = vmatprep.subr.bf16.mxu0 0
    %520 = vmatpush1.bf16.msra.mxu0 %v391
    %521 = vmatprep.subr.bf16.mxu0 0
    %522 = vmatpush1.bf16.msra.mxu0 %v392
    %523 = vmatprep.subr.bf16.mxu0 0
    %524 = vmatpush1.bf16.msra.mxu0 %v393
    %525 = vmatprep.subr.bf16.mxu0 0
    %526 = vmatpush1.bf16.msra.mxu0 %v394
    %527 = vmatprep.subr.bf16.mxu0 0
    %528 = vmatpush1.bf16.msra.mxu0 %v395
    %529 = vmatprep.subr.bf16.mxu0 0
    %530 = vmatpush1.bf16.msra.mxu0 %v396
    %531 = vmatprep.subr.bf16.mxu0 0
    %532 = vmatpush1.bf16.msra.mxu0 %v397
    %533 = vmatprep.subr.bf16.mxu0 0
    %534 = vmatpush1.bf16.msra.mxu0 %v398
    %535 = vmatprep.subr.bf16.mxu0 0
    %536 = vmatpush1.bf16.msra.mxu0 %v399
    %537 = vmatprep.subr.bf16.mxu0 0
    %538 = vmatpush1.bf16.msra.mxu0 %v400
    %539 = vmatprep.subr.bf16.mxu0 0
    %540 = vmatpush1.bf16.msra.mxu0 %v401
    %541 = vmatprep.subr.bf16.mxu0 0
    %542 = vmatpush1.bf16.msra.mxu0 %v402
    %543 = vmatprep.subr.bf16.mxu0 0
    %544 = vmatpush1.bf16.msra.mxu0 %v403
    %545 = vmatprep.subr.bf16.mxu0 0
    %546 = vmatpush1.bf16.msra.mxu0 %v404
    %547 = vmatprep.subr.bf16.mxu0 0
    %548 = vmatpush1.bf16.msra.mxu0 %v405
    %549 = vmatprep.mubr.bf16.mxu0 %v71
    %550 = vmatmul.mubr.bf16.gmra.mrb[0].mxu0 %v70
    %v551 = vpop.f32.mrb[0].mxu0
    %v552 = vadd.f32 %v511, %v551
    %v553 = vpop.f32.mrb[0].mxu0
    %v554 = vpop.f32.mrb[0].mxu0
    %v555 = vadd.f32 %v514, %v554
    %v556 = vpop.f32.mrb[0].mxu0
    %557 = vdwg.mxu0
    %558 = vmatprep.subr.bf16.mxu0 0
    %559 = vmatpush1.bf16.msra.mxu0 %v406
    %560 = vmatprep.subr.bf16.mxu0 0
    %561 = vmatpush1.bf16.msra.mxu0 %v407
    %562 = vmatprep.subr.bf16.mxu0 0
    %563 = vmatpush1.bf16.msra.mxu0 %v408
    %564 = vmatprep.subr.bf16.mxu0 0
    %565 = vmatpush1.bf16.msra.mxu0 %v409
    %566 = vmatprep.subr.bf16.mxu0 0
    %567 = vmatpush1.bf16.msra.mxu0 %v410
    %568 = vmatprep.subr.bf16.mxu0 0
    %569 = vmatpush1.bf16.msra.mxu0 %v411
    %570 = vmatprep.subr.bf16.mxu0 0
    %571 = vmatpush1.bf16.msra.mxu0 %v412
    %572 = vmatprep.subr.bf16.mxu0 0
    %573 = vmatpush1.bf16.msra.mxu0 %v413
    %574 = vmatprep.subr.bf16.mxu0 0
    %575 = vmatpush1.bf16.msra.mxu0 %v414
    %576 = vmatprep.subr.bf16.mxu0 0
    %577 = vmatpush1.bf16.msra.mxu0 %v415
    %578 = vmatprep.subr.bf16.mxu0 0
    %579 = vmatpush1.bf16.msra.mxu0 %v416
    %580 = vmatprep.subr.bf16.mxu0 0
    %581 = vmatpush1.bf16.msra.mxu0 %v417
    %582 = vmatprep.subr.bf16.mxu0 0
    %583 = vmatpush1.bf16.msra.mxu0 %v418
    %584 = vmatprep.subr.bf16.mxu0 0
    %585 = vmatpush1.bf16.msra.mxu0 %v419
    %586 = vmatprep.subr.bf16.mxu0 0
    %587 = vmatpush1.bf16.msra.mxu0 %v420
    %588 = vmatprep.subr.bf16.mxu0 0
    %589 = vmatpush1.bf16.msra.mxu0 %v421
    %590 = vmatprep.mubr.bf16.mxu0 %v73
    %591 = vmatmul.mubr.bf16.gmra.mrb[0].mxu0 %v72
    %v592 = vpop.f32.mrb[0].mxu0
    %v593 = vadd.f32 %v552, %v592
    %v594 = vpop.f32.mrb[0].mxu0
    %v595 = vpop.f32.mrb[0].mxu0
    %v596 = vadd.f32 %v555, %v595
    %v597 = vpop.f32.mrb[0].mxu0
    %598 = vdwg.mxu0
    %599 = vmatprep.subr.bf16.mxu0 0
    %600 = vmatpush1.bf16.msra.mxu0 %v422
    %601 = vmatprep.subr.bf16.mxu0 0
    %602 = vmatpush1.bf16.msra.mxu0 0
    %603 = vmatprep.subr.bf16.mxu0 0
    %604 = vmatpush1.bf16.msra.mxu0 0
    %605 = vmatprep.subr.bf16.mxu0 0
    %606 = vmatpush1.bf16.msra.mxu0 0
    %607 = vmatprep.subr.bf16.mxu0 0
    %608 = vmatpush1.bf16.msra.mxu0 0
    %609 = vmatprep.subr.bf16.mxu0 0
    %610 = vmatpush1.bf16.msra.mxu0 0
    %611 = vmatprep.subr.bf16.mxu0 0
    %612 = vmatpush1.bf16.msra.mxu0 0
    %613 = vmatprep.subr.bf16.mxu0 0
    %614 = vmatpush1.bf16.msra.mxu0 0
    %615 = vmatprep.subr.bf16.mxu0 0
    %616 = vmatpush1.bf16.msra.mxu0 0
    %617 = vmatprep.subr.bf16.mxu0 0
    %618 = vmatpush1.bf16.msra.mxu0 0
    %619 = vmatprep.subr.bf16.mxu0 0
    %620 = vmatpush1.bf16.msra.mxu0 0
    %621 = vmatprep.subr.bf16.mxu0 0
    %622 = vmatpush1.bf16.msra.mxu0 0
    %623 = vmatprep.subr.bf16.mxu0 0
    %624 = vmatpush1.bf16.msra.mxu0 0
    %625 = vmatprep.subr.bf16.mxu0 0
    %626 = vmatpush1.bf16.msra.mxu0 0
    %627 = vmatprep.subr.bf16.mxu0 0
    %628 = vmatpush1.bf16.msra.mxu0 0
    %629 = vmatprep.subr.bf16.mxu0 0
    %630 = vmatpush1.bf16.msra.mxu0 0
    %631 = vmatprep.mubr.bf16.mxu0 0
    %632 = vmatmul.mubr.bf16.gmra.mrb[0].mxu0 %v474
    %v633 = vpop.f32.mrb[0].mxu0
    %v634 = vadd.f32 %v593, %v633
    %v635 = vpop.f32.mrb[0].mxu0
    %v636 = vpop.f32.mrb[0].mxu0
    %v637 = vadd.f32 %v596, %v636
    %v638 = vpop.f32.mrb[0].mxu0
    %639 = vdwg.mxu0
    %v640 = vmax.f32 %v634, 0.0
    %v641 = vmax.f32 %v637, 0.0
    %v642 = vpack.c.bf16 %v641, %v640
    %v644 = vunpack.c.l.b16 %v642
    %v645 = vunpack.c.h.b16 %v642
    %v646 = vpack.c.b16 %v644, %v644
    %v647 = vpack.c.b16 %v645, %v645
    %650 = vst [vmem:[%s6] sm:$0xf] %v646
    %651 = vst [vmem:[%s6 + $0x4] sm:$0xf] %v647
    %v652 = vld [vmem:[#allocation4] sm:$0xf]
    %v653 = vld [vmem:[#allocation4 + $0x4] sm:$0xf]
    %v654 = vld [vmem:[#allocation4 + $0x8] sm:$0xf]
    %v655 = vld [vmem:[#allocation4 + $0xc] sm:$0xf]
    %v656 = vld [vmem:[#allocation4 + $0x10] sm:$0xf]
    %v657 = vld [vmem:[#allocation4 + $0x14] sm:$0xf]
    %v658 = vld [vmem:[#allocation4 + $0x18] sm:$0xf]
    %v659 = vld [vmem:[#allocation4 + $0x1c] sm:$0xf]
    %v660 = vld [vmem:[#allocation4 + $0x20] sm:$0xf]
    %v661 = vld [vmem:[#allocation4 + $0x24] sm:$0xf]
    %v662 = vld [vmem:[#allocation4 + $0x28] sm:$0xf]
    %v663 = vld [vmem:[#allocation4 + $0x2c] sm:$0xf]
    %v664 = vld [vmem:[#allocation4 + $0x30] sm:$0xf]
    %v665 = vld [vmem:[#allocation4 + $0x34] sm:$0xf]
    %v666 = vld [vmem:[#allocation4 + $0x38] sm:$0xf]
    %v667 = vld [vmem:[#allocation4 + $0x3c] sm:$0xf]
    %v668 = vld [vmem:[%s4 + $0x1] sm:$0x1]
    %v669 = vlaneseq
    %v670 = vshrl.u32 %v669, 7
    %v671 = vsub.s32 0, %v670
    %v672 = vrot.slane %v668, %v671
    %v689 = vunpack.c.l.b16 %v652
    %v690 = vunpack.c.l.b16 %v653
    %v691 = vunpack.c.l.b16 %v654
    %v692 = vunpack.c.l.b16 %v655
    %v693 = vunpack.c.l.b16 %v656
    %v694 = vunpack.c.l.b16 %v657
    %v695 = vunpack.c.l.b16 %v658
    %v696 = vunpack.c.l.b16 %v659
    %v697 = vunpack.c.l.b16 %v660
    %v698 = vunpack.c.l.b16 %v661
    %v699 = vunpack.c.l.b16 %v662
    %v700 = vunpack.c.l.b16 %v663
    %v701 = vunpack.c.l.b16 %v664
    %v702 = vunpack.c.l.b16 %v665
    %v703 = vunpack.c.l.b16 %v666
    %v704 = vunpack.c.l.b16 %v667
    %v705 = vpack.c.b16 %v690, %v689
    %v706 = vpack.c.b16 %v692, %v691
    %v707 = vpack.c.b16 %v694, %v693
    %v708 = vpack.c.b16 %v696, %v695
    %v709 = vpack.c.b16 %v698, %v697
    %v710 = vpack.c.b16 %v700, %v699
    %v711 = vpack.c.b16 %v702, %v701
    %v712 = vpack.c.b16 %v704, %v703
    %721 = vmatprep.subr.bf16.mxu0 0
    %722 = vmatpush1.bf16.msra.mxu0 %v705
    %723 = vmatprep.subr.bf16.mxu0 0
    %724 = vmatpush1.bf16.msra.mxu0 %v706
    %725 = vmatprep.subr.bf16.mxu0 0
    %726 = vmatpush1.bf16.msra.mxu0 %v707
    %727 = vmatprep.subr.bf16.mxu0 0
    %728 = vmatpush1.bf16.msra.mxu0 %v708
    %729 = vmatprep.subr.bf16.mxu0 0
    %730 = vmatpush1.bf16.msra.mxu0 %v709
    %731 = vmatprep.subr.bf16.mxu0 0
    %732 = vmatpush1.bf16.msra.mxu0 %v710
    %733 = vmatprep.subr.bf16.mxu0 0
    %734 = vmatpush1.bf16.msra.mxu0 %v711
    %735 = vmatprep.subr.bf16.mxu0 0
    %736 = vmatpush1.bf16.msra.mxu0 %v712
    %737 = vmatprep.subr.bf16.mxu0 0
    %738 = vmatpush1.bf16.msra.mxu0 0
    %739 = vmatprep.subr.bf16.mxu0 0
    %740 = vmatpush1.bf16.msra.mxu0 0
    %741 = vmatprep.subr.bf16.mxu0 0
    %742 = vmatpush1.bf16.msra.mxu0 0
    %743 = vmatprep.subr.bf16.mxu0 0
    %744 = vmatpush1.bf16.msra.mxu0 0
    %745 = vmatprep.subr.bf16.mxu0 0
    %746 = vmatpush1.bf16.msra.mxu0 0
    %747 = vmatprep.subr.bf16.mxu0 0
    %748 = vmatpush1.bf16.msra.mxu0 0
    %749 = vmatprep.subr.bf16.mxu0 0
    %750 = vmatpush1.bf16.msra.mxu0 0
    %751 = vmatprep.subr.bf16.mxu0 0
    %752 = vmatpush1.bf16.msra.mxu0 0
    %753 = vmatprep.mubr.bf16.mxu0 0
    %754 = vmatmul.mubr.bf16.gmra.mrb[0].mxu0 %v642
    %v755 = vpop.f32.mrb[0].mxu0
    %v756 = vadd.f32 %v672, %v755
    %v757 = vpop.f32.mrb[0].mxu0
    %v758 = vpop.f32.mrb[0].mxu0
    %v759 = vadd.f32 %v672, %v758
    %v760 = vpop.f32.mrb[0].mxu0
    %761 = vdwg.mxu0
    %v762 = vmax.f32 %v756, 0.0
    %v763 = vmax.f32 %v759, 0.0
    %v764 = vpack.c.bf16 %v763, %v762
    %v766 = vunpack.c.l.b16 %v764
    %v767 = vunpack.c.h.b16 %v764
    %v768 = vpack.c.b16 %v766, %v766
    %v769 = vpack.c.b16 %v767, %v767
    %772 = vst [vmem:[%s7] sm:$0xf] %v768
    %773 = vst [vmem:[%s7 + $0x4] sm:$0xf] %v769
    %s774 = scalar_lea.vmem [#allocation4], 64
    %v775 = vld [vmem:[%s774] sm:$0xf]
    %v776 = vld [vmem:[%s774 + $0x4] sm:$0xf]
    %v777 = vld [vmem:[%s774 + $0x8] sm:$0xf]
    %v778 = vld [vmem:[%s774 + $0xc] sm:$0xf]
    %v779 = vld [vmem:[%s774 + $0x10] sm:$0xf]
    %v780 = vld [vmem:[%s774 + $0x14] sm:$0xf]
    %v781 = vld [vmem:[%s774 + $0x18] sm:$0xf]
    %v782 = vld [vmem:[%s774 + $0x1c] sm:$0xf]
    %v783 = vld [vmem:[%s774 + $0x20] sm:$0xf]
    %v784 = vld [vmem:[%s774 + $0x24] sm:$0xf]
    %v785 = vld [vmem:[%s774 + $0x28] sm:$0xf]
    %v786 = vld [vmem:[%s774 + $0x2c] sm:$0xf]
    %v787 = vld [vmem:[%s774 + $0x30] sm:$0xf]
    %v788 = vld [vmem:[%s774 + $0x34] sm:$0xf]
    %v789 = vld [vmem:[%s774 + $0x38] sm:$0xf]
    %v790 = vld [vmem:[%s774 + $0x3c] sm:$0xf]
    %v791 = vld [vmem:[%s4 + $0x2] sm:$0x1]
    %v792 = vlaneseq
    %v793 = vshrl.u32 %v792, 7
    %v794 = vsub.s32 0, %v793
    %v795 = vrot.slane %v791, %v794
    %v812 = vunpack.c.l.b16 %v775
    %v813 = vunpack.c.l.b16 %v776
    %v814 = vunpack.c.l.b16 %v777
    %v815 = vunpack.c.l.b16 %v778
    %v816 = vunpack.c.l.b16 %v779
    %v817 = vunpack.c.l.b16 %v780
    %v818 = vunpack.c.l.b16 %v781
    %v819 = vunpack.c.l.b16 %v782
    %v820 = vunpack.c.l.b16 %v783
    %v821 = vunpack.c.l.b16 %v784
    %v822 = vunpack.c.l.b16 %v785
    %v823 = vunpack.c.l.b16 %v786
    %v824 = vunpack.c.l.b16 %v787
    %v825 = vunpack.c.l.b16 %v788
    %v826 = vunpack.c.l.b16 %v789
    %v827 = vunpack.c.l.b16 %v790
    %v828 = vpack.c.b16 %v813, %v812
    %v829 = vpack.c.b16 %v815, %v814
    %v830 = vpack.c.b16 %v817, %v816
    %v831 = vpack.c.b16 %v819, %v818
    %v832 = vpack.c.b16 %v821, %v820
    %v833 = vpack.c.b16 %v823, %v822
    %v834 = vpack.c.b16 %v825, %v824
    %v835 = vpack.c.b16 %v827, %v826
    %844 = vmatprep.subr.bf16.mxu0 0
    %845 = vmatpush1.bf16.msra.mxu0 %v828
    %846 = vmatprep.subr.bf16.mxu0 0
    %847 = vmatpush1.bf16.msra.mxu0 %v829
    %848 = vmatprep.subr.bf16.mxu0 0
    %849 = vmatpush1.bf16.msra.mxu0 %v830
    %850 = vmatprep.subr.bf16.mxu0 0
    %851 = vmatpush1.bf16.msra.mxu0 %v831
    %852 = vmatprep.subr.bf16.mxu0 0
    %853 = vmatpush1.bf16.msra.mxu0 %v832
    %854 = vmatprep.subr.bf16.mxu0 0
    %855 = vmatpush1.bf16.msra.mxu0 %v833
    %856 = vmatprep.subr.bf16.mxu0 0
    %857 = vmatpush1.bf16.msra.mxu0 %v834
    %858 = vmatprep.subr.bf16.mxu0 0
    %859 = vmatpush1.bf16.msra.mxu0 %v835
    %860 = vmatprep.subr.bf16.mxu0 0
    %861 = vmatpush1.bf16.msra.mxu0 0
    %862 = vmatprep.subr.bf16.mxu0 0
    %863 = vmatpush1.bf16.msra.mxu0 0
    %864 = vmatprep.subr.bf16.mxu0 0
    %865 = vmatpush1.bf16.msra.mxu0 0
    %866 = vmatprep.subr.bf16.mxu0 0
    %867 = vmatpush1.bf16.msra.mxu0 0
    %868 = vmatprep.subr.bf16.mxu0 0
    %869 = vmatpush1.bf16.msra.mxu0 0
    %870 = vmatprep.subr.bf16.mxu0 0
    %871 = vmatpush1.bf16.msra.mxu0 0
    %872 = vmatprep.subr.bf16.mxu0 0
    %873 = vmatpush1.bf16.msra.mxu0 0
    %874 = vmatprep.subr.bf16.mxu0 0
    %875 = vmatpush1.bf16.msra.mxu0 0
    %876 = vmatprep.mubr.bf16.mxu0 0
    %877 = vmatmul.mubr.bf16.gmra.mrb[0].mxu0 %v764
    %v878 = vpop.f32.mrb[0].mxu0
    %v879 = vadd.f32 %v795, %v878
    %v880 = vpop.f32.mrb[0].mxu0
    %v881 = vpop.f32.mrb[0].mxu0
    %v882 = vadd.f32 %v795, %v881
    %v883 = vpop.f32.mrb[0].mxu0
    %884 = vdwg.mxu0
    %v885 = vmax.f32 %v879, 0.0
    %v886 = vmax.f32 %v882, 0.0
    %v887 = vpack.c.bf16 %v886, %v885
    %v889 = vunpack.c.l.b16 %v887
    %v890 = vunpack.c.h.b16 %v887
    %v891 = vpack.c.b16 %v889, %v889
    %v892 = vpack.c.b16 %v890, %v890
    %895 = vst [vmem:[%s8] sm:$0xf] %v891
    %896 = vst [vmem:[%s8 + $0x4] sm:$0xf] %v892
    %s897 = scalar_lea.vmem [#allocation4], 128
    %v898 = vld [vmem:[%s897] sm:$0xf]
    %v899 = vld [vmem:[%s897 + $0x4] sm:$0xf]
    %v900 = vld [vmem:[%s897 + $0x8] sm:$0xf]
    %v901 = vld [vmem:[%s897 + $0xc] sm:$0xf]
    %v902 = vld [vmem:[%s897 + $0x10] sm:$0xf]
    %v903 = vld [vmem:[%s897 + $0x14] sm:$0xf]
    %v904 = vld [vmem:[%s897 + $0x18] sm:$0xf]
    %v905 = vld [vmem:[%s897 + $0x1c] sm:$0xf]
    %v906 = vld [vmem:[%s897 + $0x20] sm:$0xf]
    %v907 = vld [vmem:[%s897 + $0x24] sm:$0xf]
    %v908 = vld [vmem:[%s897 + $0x28] sm:$0xf]
    %v909 = vld [vmem:[%s897 + $0x2c] sm:$0xf]
    %v910 = vld [vmem:[%s897 + $0x30] sm:$0xf]
    %v911 = vld [vmem:[%s897 + $0x34] sm:$0xf]
    %v912 = vld [vmem:[%s897 + $0x38] sm:$0xf]
    %v913 = vld [vmem:[%s897 + $0x3c] sm:$0xf]
    %v914 = vld [vmem:[%s4 + $0x3] sm:$0x1]
    %v915 = vlaneseq
    %v916 = vshrl.u32 %v915, 7
    %v917 = vsub.s32 0, %v916
    %v918 = vrot.slane %v914, %v917
    %v935 = vunpack.c.l.b16 %v898
    %v936 = vunpack.c.l.b16 %v899
    %v937 = vunpack.c.l.b16 %v900
    %v938 = vunpack.c.l.b16 %v901
    %v939 = vunpack.c.l.b16 %v902
    %v940 = vunpack.c.l.b16 %v903
    %v941 = vunpack.c.l.b16 %v904
    %v942 = vunpack.c.l.b16 %v905
    %v943 = vunpack.c.l.b16 %v906
    %v944 = vunpack.c.l.b16 %v907
    %v945 = vunpack.c.l.b16 %v908
    %v946 = vunpack.c.l.b16 %v909
    %v947 = vunpack.c.l.b16 %v910
    %v948 = vunpack.c.l.b16 %v911
    %v949 = vunpack.c.l.b16 %v912
    %v950 = vunpack.c.l.b16 %v913
    %v951 = vpack.c.b16 %v936, %v935
    %v952 = vpack.c.b16 %v938, %v937
    %v953 = vpack.c.b16 %v940, %v939
    %v954 = vpack.c.b16 %v942, %v941
    %v955 = vpack.c.b16 %v944, %v943
    %v956 = vpack.c.b16 %v946, %v945
    %v957 = vpack.c.b16 %v948, %v947
    %v958 = vpack.c.b16 %v950, %v949
    %967 = vmatprep.subr.bf16.mxu0 0
    %968 = vmatpush1.bf16.msra.mxu0 %v951
    %969 = vmatprep.subr.bf16.mxu0 0
    %970 = vmatpush1.bf16.msra.mxu0 %v952
    %971 = vmatprep.subr.bf16.mxu0 0
    %972 = vmatpush1.bf16.msra.mxu0 %v953
    %973 = vmatprep.subr.bf16.mxu0 0
    %974 = vmatpush1.bf16.msra.mxu0 %v954
    %975 = vmatprep.subr.bf16.mxu0 0
    %976 = vmatpush1.bf16.msra.mxu0 %v955
    %977 = vmatprep.subr.bf16.mxu0 0
    %978 = vmatpush1.bf16.msra.mxu0 %v956
    %979 = vmatprep.subr.bf16.mxu0 0
    %980 = vmatpush1.bf16.msra.mxu0 %v957
    %981 = vmatprep.subr.bf16.mxu0 0
    %982 = vmatpush1.bf16.msra.mxu0 %v958
    %983 = vmatprep.subr.bf16.mxu0 0
    %984 = vmatpush1.bf16.msra.mxu0 0
    %985 = vmatprep.subr.bf16.mxu0 0
    %986 = vmatpush1.bf16.msra.mxu0 0
    %987 = vmatprep.subr.bf16.mxu0 0
    %988 = vmatpush1.bf16.msra.mxu0 0
    %989 = vmatprep.subr.bf16.mxu0 0
    %990 = vmatpush1.bf16.msra.mxu0 0
    %991 = vmatprep.subr.bf16.mxu0 0
    %992 = vmatpush1.bf16.msra.mxu0 0
    %993 = vmatprep.subr.bf16.mxu0 0
    %994 = vmatpush1.bf16.msra.mxu0 0
    %995 = vmatprep.subr.bf16.mxu0 0
    %996 = vmatpush1.bf16.msra.mxu0 0
    %997 = vmatprep.subr.bf16.mxu0 0
    %998 = vmatpush1.bf16.msra.mxu0 0
    %999 = vmatprep.mubr.bf16.mxu0 0
    %1000 = vmatmul.mubr.bf16.gmra.mrb[0].mxu0 %v887
    %v1001 = vpop.f32.mrb[0].mxu0
    %v1002 = vadd.f32 %v918, %v1001
    %v1003 = vpop.f32.mrb[0].mxu0
    %v1004 = vpop.f32.mrb[0].mxu0
    %v1005 = vadd.f32 %v918, %v1004
    %v1006 = vpop.f32.mrb[0].mxu0
    %1007 = vdwg.mxu0
    %v1008 = vmax.f32 %v1002, 0.0
    %v1009 = vmax.f32 %v1005, 0.0
    %v1010 = vpack.c.bf16 %v1009, %v1008
    %v1012 = vunpack.c.l.b16 %v1010
    %v1013 = vunpack.c.h.b16 %v1010
    %v1014 = vpack.c.b16 %v1012, %v1012
    %v1015 = vpack.c.b16 %v1013, %v1013
    %1018 = vst [vmem:[%s9] sm:$0xf] %v1014
    %1019 = vst [vmem:[%s9 + $0x4] sm:$0xf] %v1015
    %v1020 = vld [vmem:[%s3] sm:$0xf]
    %v1021 = vld [vmem:[%s3 + $0x4] sm:$0xf]
    %v1022 = vld [vmem:[%s3 + $0x8] sm:$0xf]
    %v1023 = vld [vmem:[%s3 + $0xc] sm:$0xf]
    %v1024 = vld [vmem:[%s3 + $0x10] sm:$0xf]
    %v1025 = vld [vmem:[%s3 + $0x14] sm:$0xf]
    %v1026 = vld [vmem:[%s3 + $0x18] sm:$0xf]
    %v1027 = vld [vmem:[%s3 + $0x1c] sm:$0xf]
    %v1028 = vld [vmem:[%s3 + $0x20] sm:$0xf]
    %v1029 = vld [vmem:[%s3 + $0x24] sm:$0xf]
    %v1030 = vld [vmem:[%s3 + $0x28] sm:$0xf]
    %v1031 = vld [vmem:[%s3 + $0x2c] sm:$0xf]
    %v1032 = vld [vmem:[%s3 + $0x30] sm:$0xf]
    %v1033 = vld [vmem:[%s3 + $0x34] sm:$0xf]
    %v1034 = vld [vmem:[%s3 + $0x38] sm:$0xf]
    %v1035 = vld [vmem:[%s3 + $0x3c] sm:$0xf]
    %v1036 = vld [vmem:[%s4 + $0x4] sm:$0x1]
    %v1037 = vlaneseq
    %v1038 = vshrl.u32 %v1037, 7
    %v1039 = vsub.s32 0, %v1038
    %v1040 = vrot.slane %v1036, %v1039
    %v1057 = vunpack.c.l.b16 %v1020
    %v1058 = vunpack.c.l.b16 %v1021
    %v1059 = vunpack.c.l.b16 %v1022
    %v1060 = vunpack.c.l.b16 %v1023
    %v1061 = vunpack.c.l.b16 %v1024
    %v1062 = vunpack.c.l.b16 %v1025
    %v1063 = vunpack.c.l.b16 %v1026
    %v1064 = vunpack.c.l.b16 %v1027
    %v1065 = vunpack.c.l.b16 %v1028
    %v1066 = vunpack.c.l.b16 %v1029
    %v1067 = vunpack.c.l.b16 %v1030
    %v1068 = vunpack.c.l.b16 %v1031
    %v1069 = vunpack.c.l.b16 %v1032
    %v1070 = vunpack.c.l.b16 %v1033
    %v1071 = vunpack.c.l.b16 %v1034
    %v1072 = vunpack.c.l.b16 %v1035
    %v1073 = vpack.c.b16 %v1058, %v1057
    %v1074 = vpack.c.b16 %v1060, %v1059
    %v1075 = vpack.c.b16 %v1062, %v1061
    %v1076 = vpack.c.b16 %v1064, %v1063
    %v1077 = vpack.c.b16 %v1066, %v1065
    %v1078 = vpack.c.b16 %v1068, %v1067
    %v1079 = vpack.c.b16 %v1070, %v1069
    %v1080 = vpack.c.b16 %v1072, %v1071
    %1089 = vmatprep.subr.bf16.mxu0 0
    %1090 = vmatpush1.bf16.msra.mxu0 %v1073
    %1091 = vmatprep.subr.bf16.mxu0 0
    %1092 = vmatpush1.bf16.msra.mxu0 %v1074
    %1093 = vmatprep.subr.bf16.mxu0 0
    %1094 = vmatpush1.bf16.msra.mxu0 %v1075
    %1095 = vmatprep.subr.bf16.mxu0 0
    %1096 = vmatpush1.bf16.msra.mxu0 %v1076
    %1097 = vmatprep.subr.bf16.mxu0 0
    %1098 = vmatpush1.bf16.msra.mxu0 %v1077
    %1099 = vmatprep.subr.bf16.mxu0 0
    %1100 = vmatpush1.bf16.msra.mxu0 %v1078
    %1101 = vmatprep.subr.bf16.mxu0 0
    %1102 = vmatpush1.bf16.msra.mxu0 %v1079
    %1103 = vmatprep.subr.bf16.mxu0 0
    %1104 = vmatpush1.bf16.msra.mxu0 %v1080
    %1105 = vmatprep.subr.bf16.mxu0 0
    %1106 = vmatpush1.bf16.msra.mxu0 0
    %1107 = vmatprep.subr.bf16.mxu0 0
    %1108 = vmatpush1.bf16.msra.mxu0 0
    %1109 = vmatprep.subr.bf16.mxu0 0
    %1110 = vmatpush1.bf16.msra.mxu0 0
    %1111 = vmatprep.subr.bf16.mxu0 0
    %1112 = vmatpush1.bf16.msra.mxu0 0
    %1113 = vmatprep.subr.bf16.mxu0 0
    %1114 = vmatpush1.bf16.msra.mxu0 0
    %1115 = vmatprep.subr.bf16.mxu0 0
    %1116 = vmatpush1.bf16.msra.mxu0 0
    %1117 = vmatprep.subr.bf16.mxu0 0
    %1118 = vmatpush1.bf16.msra.mxu0 0
    %1119 = vmatprep.subr.bf16.mxu0 0
    %1120 = vmatpush1.bf16.msra.mxu0 0
    %1121 = vmatprep.mubr.bf16.mxu0 0
    %1122 = vmatmul.mubr.bf16.gmra.mrb[0].mxu0 %v1010
    %v1123 = vpop.f32.mrb[0].mxu0
    %v1124 = vadd.f32 %v1040, %v1123
    %v1125 = vpop.f32.mrb[0].mxu0
    %v1126 = vpop.f32.mrb[0].mxu0
    %v1127 = vadd.f32 %v1040, %v1126
    %v1128 = vpop.f32.mrb[0].mxu0
    %1129 = vdwg.mxu0
    %1130 = vst [vmem:[%s5] sm:$0xff] %v1124
    %1131 = vst [vmem:[%s5 + $0x8] sm:$0xff] %v1127
    // Predicated region
    $region30: #{_mlp_forward_prepared.1} parent=1 // pred_check
      _
    $region31: #{_mlp_forward_prepared.1} parent=1 // pred_check_branch
      %1133 = sbr.rel (0) target = $region33
    $region32: #{_mlp_forward_prepared.1} parent=1 // pred_region
      _
    $region33: #{_mlp_forward_prepared.1} parent=1 // pred_fallthru
      _
    // Predicated region
    $region34: #{_mlp_forward_prepared.1} parent=1 // pred_check
      _
    $region35: #{_mlp_forward_prepared.1} parent=1 // pred_check_branch
      %1135 = sbr.rel (0) target = $region37
    $region36: #{_mlp_forward_prepared.1} parent=1 // pred_region
      _
    $region37: #{_mlp_forward_prepared.1} parent=1 // pred_fallthru
      _
    // Predicated region
    $region38: #{_mlp_forward_prepared.1} parent=1 // pred_check
      _
    $region39: #{_mlp_forward_prepared.1} parent=1 // pred_check_branch
      %1137 = sbr.rel (0) target = $region41
    $region40: #{_mlp_forward_prepared.1} parent=1 // pred_region
      _
    $region41: #{_mlp_forward_prepared.1} parent=1 // pred_fallthru
      _
    // Predicated region
    $region42: #{_mlp_forward_prepared.1} parent=1 // pred_check
      _
    $region43: #{_mlp_forward_prepared.1} parent=1 // pred_check_branch
      %1139 = sbr.rel (0) target = $region45
    $region44: #{_mlp_forward_prepared.1} parent=1 // pred_region
      _
    $region45: #{_mlp_forward_prepared.1} parent=1 // pred_fallthru
      _
    // Predicated region
    $region46: #{_mlp_forward_prepared.1} parent=1 // pred_check
      _
    $region47: #{_mlp_forward_prepared.1} parent=1 // pred_check_branch
      %1141 = sbr.rel (0) target = $region49
    $region48: #{_mlp_forward_prepared.1} parent=1 // pred_region
      _
    $region49: #{_mlp_forward_prepared.1} parent=1 // pred_fallthru
      _
    // Predicated region
    $region50: #{_mlp_forward_prepared.1} parent=1 // pred_check
      _
    $region51: #{_mlp_forward_prepared.1} parent=1 // pred_check_branch
      %1143 = sbr.rel (0) target = $region53
    $region52: #{_mlp_forward_prepared.1} parent=1 // pred_region
      _
    $region53: #{_mlp_forward_prepared.1} parent=1 // pred_fallthru
      _
    // Predicated region
    $region54: #{_mlp_forward_prepared.1} parent=1 // pred_check
      _
    $region55: #{_mlp_forward_prepared.1} parent=1 // pred_check_branch
      %1145 = sbr.rel (0) target = $region57
    $region56: #{_mlp_forward_prepared.1} parent=1 // pred_region
      _
    $region57: #{_mlp_forward_prepared.1} parent=1 // pred_fallthru
      _
    // Predicated region
    $region58: #{_mlp_forward_prepared.1} parent=1 // pred_check
      _
    $region59: #{_mlp_forward_prepared.1} parent=1 // pred_check_branch
      %1147 = sbr.rel (0) target = $region61
    $region60: #{_mlp_forward_prepared.1} parent=1 // pred_region
      _
    $region61: #{_mlp_forward_prepared.1} parent=1 // pred_fallthru
      _
    // Predicated region
    $region62: #{_mlp_forward_prepared.1} parent=1 // pred_check
      _
    $region63: #{_mlp_forward_prepared.1} parent=1 // pred_check_branch
      %1149 = sbr.rel (0) target = $region65
    $region64: #{_mlp_forward_prepared.1} parent=1 // pred_region
      _
    $region65: #{_mlp_forward_prepared.1} parent=1 // pred_fallthru
      _
    // Predicated region
    $region66: #{_mlp_forward_prepared.1} parent=1 // pred_check
      _
    $region67: #{_mlp_forward_prepared.1} parent=1 // pred_check_branch
      %1151 = sbr.rel (0) target = $region69
    $region68: #{_mlp_forward_prepared.1} parent=1 // pred_region
      _
    $region69: #{_mlp_forward_prepared.1} parent=1 // pred_fallthru
      _
    %1152 = vsyncpa [#allocation3], 1
    %1153 = vsyncpa [#allocation5], 1

</llo_original>
